<compile_context>
chip_gen: v7x
topology: tpu7x:2x2x1
jax: 0.10.0
libtpu: 0.0.40
codegen_flags: <defaults>
</compile_context>

<pallas_src>
import jax
import jax.numpy as jnp
from jax import lax
from jax.experimental import pallas as pl
from jax.experimental.pallas import tpu as pltpu

_RADIUS = 1.0
_NS_COEFFS = (3.4445, -4.7750, 2.0315)   # standard Newton–Schulz quintic coeffs
_NS_ITERS = 5
_EPS = 1e-7


def _scaled_eye(s, scale):
    """(1, s, s) f32 identity * scale, built with 2-D-safe iotas."""
    rows = lax.broadcasted_iota(jnp.int32, (1, s, s), 1)
    cols = lax.broadcasted_iota(jnp.int32, (1, s, s), 2)
    return jnp.where(rows == cols, jnp.float32(scale), jnp.float32(0.0))


def _ns_direction(g):
    """-RADIUS * polar(g) for g of shape (b, S, L), S = Gram side (S <= L).

    bf16 matmul operands, f32 MXU accumulation; `a*I` and the final -RADIUS
    are folded into the tiny (S, S) polynomial matrix so per-iteration
    full-block work is just two dots and one cast.  Returns f32 (b, S, L).
    Shared verbatim between the Pallas kernel body and the XLA reference.
    """
    a, b_c, c_c = _NS_COEFFS
    s = g.shape[1]

    g32 = g.astype(jnp.float32)
    gss = jnp.sum(g32 * g32, axis=(1, 2), keepdims=True)       # (b, 1, 1)
    y = (g32 * lax.rsqrt(gss + _EPS)).astype(jnp.bfloat16)     # NS state, bf16

    eye_a = _scaled_eye(s, a)                                  # hoisted, tiny

    for it in range(_NS_ITERS):
        # A = y y^T on the min side: contraction over the lane axis of both.
        A = lax.dot_general(y, y, (((2,), (2,)), ((0,), (0,))),
                            preferred_element_type=jnp.float32)     # (b,S,S)
        Ab = A.astype(jnp.bfloat16)
        A2 = lax.dot_general(Ab, Ab, (((2,), (1,)), ((0,), (0,))),
                             preferred_element_type=jnp.float32)    # (b,S,S)
        C = b_c * A + c_c * A2 + eye_a                               # tiny f32
        if it == _NS_ITERS - 1:
            C = (-_RADIUS) * C                                       # fold -r
        upd = lax.dot_general(C.astype(jnp.bfloat16), y,
                              (((2,), (1,)), ((0,), (0,))),
                              preferred_element_type=jnp.float32)   # (b,S,L)
        if it == _NS_ITERS - 1:
            return upd
        y = upd.astype(jnp.bfloat16)


def _lmo_kernel(u_ref, dir_ref):
    dir_ref[...] = _ns_direction(u_ref[...]).astype(dir_ref.dtype)


def _vmem_capacity_bytes():
    try:
        return int(pltpu.get_tpu_info().vmem_capacity_bytes)
    except Exception:
        return 64 * 1024 * 1024      # conservative (v7x per-TC physical VMEM)


def _block_working_set_bytes(bt, s, l, in_dtype):
    itm = jnp.dtype(in_dtype).itemsize
    blk = bt * s * l
    # 2x double-buffered input + 2x double-buffered output (native dtype)
    # + bf16 NS state + f32 MXU result + tiny Gram temporaries + slack.
    return blk * (4 * itm + 2 + 4) + bt * s * s * 16 + 2 * 1024 * 1024


def _pick_batch_tile(b, s, l, in_dtype, vmem_budget):
    """Largest divisor Bt of b fitting the budget, keeping >=2 grid steps
    (so both v7x TensorCores get work via the "parallel" grid axis)."""
    best = 1
    for bt in range(1, b + 1):
        if b % bt:
            continue
        if b >= 2 and (b // bt) < 2:
            continue
        if _block_working_set_bytes(bt, s, l, in_dtype) > vmem_budget:
            continue
        best = bt
    return best


def _lmo_fun_pallas(u2, v2):
    """Concrete lmo_fun: (b, R, K) x (b, R, K) -> ((b, R, K), (b,))."""
    b, R, K = u2.shape

    # max_step is one scalar per batch — plain XLA reduction, no kernel DMA.
    v32 = v2.astype(jnp.float32)
    max_step = _RADIUS * lax.rsqrt(jnp.sum(v32 * v32, axis=(1, 2)) + _EPS)

    # Orient from LOGICAL (R, K): Gram/min side on sublanes, long side on
    # lanes.  For conv shapes (R = N*C >> K = m*n) this is the (b, K, R)
    # transposed layout — lane-dense stores, no 128-lane padding waste.
    transpose = R > K
    z = jnp.swapaxes(u2, 1, 2) if transpose else u2
    S, L = z.shape[1], z.shape[2]

    cap = _vmem_capacity_bytes()
    Bt = _pick_batch_tile(b, S, L, z.dtype, int(cap * 0.7))
    need = _block_working_set_bytes(Bt, S, L, z.dtype)
    vmem_limit = int(min(int(cap * 0.9), max(need, 16 * 1024 * 1024)))
    # TODO(synk): no tiling over the long axis L yet — one batch's (S, L)
    # matrix must fit VMEM; an inner emit_pipeline over L-tiles (Gram pass +
    # update pass per NS iteration) would lift this for very large N*C.

    out = pl.pallas_call(
        _lmo_kernel,
        out_shape=jax.ShapeDtypeStruct((b, S, L), u2.dtype),
        grid_spec=pltpu.PrefetchScalarGridSpec(
            num_scalar_prefetch=0,
            grid=(b // Bt,),
            # Full-dim blocks on the last two axes (no wrapper-side padding).
            in_specs=[pl.BlockSpec((Bt, S, L), lambda i: (i, 0, 0))],
            out_specs=pl.BlockSpec((Bt, S, L), lambda i: (i, 0, 0)),
        ),
        compiler_params=pltpu.CompilerParams(
            dimension_semantics=("parallel",),
            vmem_limit_bytes=vmem_limit,
        ),
    )(z)

    update_dir = jnp.swapaxes(out, 1, 2) if transpose else out
    return update_dir, max_step


class LMOConv:
    """JAX/Pallas port of analysis/tools.py::LMOConv (same forward glue)."""
    # TODO(synk): `lmo_fun` is an arbitrary constructor-injected callable in
    # the original module; it is instantiated here with a concrete
    # spectral-norm (Newton–Schulz polar) LMO implemented as a Pallas kernel.

    def __init__(self, lmo_fun=_lmo_fun_pallas):
        self.lmo_fun = lmo_fun

    def __call__(self, u, v):
        b, N, C, m, n = u.shape
        update_dir, max_step_size = self.lmo_fun(
            u.reshape(b, N * C, m * n), v.reshape(b, N * C, m * n))
        return update_dir.reshape(b, N, C, m, n), max_step_size


def _lmo_fun_ref(u2, v2):
    """Pure-JAX reference using the identical recipe/orientation."""
    b, R, K = u2.shape
    transpose = R > K
    z = jnp.swapaxes(u2, 1, 2) if transpose else u2
    d = _ns_direction(z).astype(u2.dtype)
    d = jnp.swapaxes(d, 1, 2) if transpose else d
    v32 = v2.astype(jnp.float32)
    step = _RADIUS * lax.rsqrt(jnp.sum(v32 * v32, axis=(1, 2)) + _EPS)
    return d, step


def _run_case(key, b, N, C, m, n):
    ku, kv = jax.random.split(key)
    u = jax.random.normal(ku, (b, N, C, m, n), dtype=jnp.float32)
    v = jax.random.normal(kv, (b, N, C, m, n), dtype=jnp.float32)

    mod = LMOConv()
    update_dir, max_step_size = mod(u, v)
    jax.block_until_ready((update_dir, max_step_size))

    ref_dir, ref_step = _lmo_fun_ref(
        u.reshape(b, N * C, m * n), v.reshape(b, N * C, m * n))
    ref_dir = ref_dir.reshape(b, N, C, m, n)

    assert update_dir.shape == (b, N, C, m, n)
    assert max_step_size.shape == (b,)
    assert jnp.allclose(update_dir, ref_dir, rtol=2e-2, atol=2e-2)
    assert jnp.allclose(max_step_size, ref_step, rtol=1e-3, atol=1e-5)


if __name__ == "__main__":
    key = jax.random.PRNGKey(0)
    k1, k2 = jax.random.split(key)

    # Case 1: R (=16) <= K (=64): natural (b, R, K) layout, Gram over R.
    _run_case(k1, b=2, N=4, C=4, m=8, n=8)

    # Case 2: conv-like R (=256) >> K (=9): transposed (b, K, R) layout,
    # 9x9 Gram, lane-dense over R.
    _run_case(k2, b=2, N=8, C=32, m=3, n=3)

    print("KERNEL_OK")
</pallas_src>

<mosaic_0001>
module attributes {stable_mosaic.version = 11 : i64} {
  func.func @_lmo_kernel(%arg0: i32, %arg1: memref<1x16x64xf32, #tpu.memory_space<vmem>>, %arg2: memref<1x16x64xf32, #tpu.memory_space<vmem>>) attributes {dimension_semantics = [#tpu.dimension_semantics<parallel>], iteration_bounds = array<i64: 2>, scalar_prefetch = 0 : i64, scratch_operands = 0 : i64, tpu.core_type = #tpu.core_type<tc>, window_params = [{transform_indices = @transform_0, window_bounds = array<i64: 1, 16, 64>}, {transform_indices = @transform_1, window_bounds = array<i64: 1, 16, 64>}]} {
    %c0 = arith.constant 0 : index
    %c0_0 = arith.constant 0 : index
    %c0_1 = arith.constant 0 : index
    %0 = vector.load %arg1[%c0, %c0_0, %c0_1] : memref<1x16x64xf32, #tpu.memory_space<vmem>>, vector<1x16x64xf32>
    %1 = arith.mulf %0, %0 : vector<1x16x64xf32>
    %cst = arith.constant dense<0.000000e+00> : vector<1xf32>
    %2 = vector.multi_reduction <add>, %1, %cst [1, 2] : vector<1x16x64xf32> to vector<1xf32>
    %3 = vector.shape_cast %2 : vector<1xf32> to vector<1x1x1xf32>
    %cst_2 = arith.constant 1.000000e-07 : f32
    %4 = vector.broadcast %cst_2 : f32 to vector<1x1x1xf32>
    %5 = arith.addf %3, %4 : vector<1x1x1xf32>
    %6 = math.rsqrt %5 : vector<1x1x1xf32>
    %7 = vector.broadcast %6 : vector<1x1x1xf32> to vector<1x16x64xf32>
    %8 = arith.mulf %0, %7 : vector<1x16x64xf32>
    %9 = arith.truncf %8 : vector<1x16x64xf32> to vector<1x16x64xbf16>
    %10 = tpu.iota {dimensions = array<i32: 1>} : vector<1x16x16xi32>
    %11 = tpu.iota {dimensions = array<i32: 2>} : vector<1x16x16xi32>
    %12 = arith.cmpi eq, %10, %11 : vector<1x16x16xi32>
    %cst_3 = arith.constant 3.444500e+00 : f32
    %cst_4 = arith.constant 0.000000e+00 : f32
    %13 = vector.broadcast %cst_3 : f32 to vector<1x16x16xf32>
    %14 = vector.broadcast %cst_4 : f32 to vector<1x16x16xf32>
    %15 = arith.select %12, %13, %14 : vector<1x16x16xi1>, vector<1x16x16xf32>
    %cst_5 = arith.constant dense<0.000000e+00> : vector<1x16x16xf32>
    %16 = tpu.matmul %9, %9, %cst_5 {dimension_numbers = #tpu.dot_dimension_numbers<[2], [2], [1], [1], [0, 0, 0, 1, 1, 1], [0], [0]>} : vector<1x16x64xbf16>, vector<1x16x64xbf16>, vector<1x16x16xf32> -> vector<1x16x16xf32>
    %17 = arith.truncf %16 : vector<1x16x16xf32> to vector<1x16x16xbf16>
    %cst_6 = arith.constant dense<0.000000e+00> : vector<1x16x16xf32>
    %18 = tpu.matmul %17, %17, %cst_6 {dimension_numbers = #tpu.dot_dimension_numbers<[2], [1], [1], [2], [0, 0, 0, 1, 1, 2], [0], [0]>} : vector<1x16x16xbf16>, vector<1x16x16xbf16>, vector<1x16x16xf32> -> vector<1x16x16xf32>
    %cst_7 = arith.constant -4.775000e+00 : f32
    %19 = vector.broadcast %cst_7 : f32 to vector<1x16x16xf32>
    %20 = arith.mulf %19, %16 : vector<1x16x16xf32>
    %cst_8 = arith.constant 2.031500e+00 : f32
    %21 = vector.broadcast %cst_8 : f32 to vector<1x16x16xf32>
    %22 = arith.mulf %21, %18 : vector<1x16x16xf32>
    %23 = arith.addf %20, %22 : vector<1x16x16xf32>
    %24 = arith.addf %23, %15 : vector<1x16x16xf32>
    %25 = arith.truncf %24 : vector<1x16x16xf32> to vector<1x16x16xbf16>
    %cst_9 = arith.constant dense<0.000000e+00> : vector<1x16x64xf32>
    %26 = tpu.matmul %25, %9, %cst_9 {dimension_numbers = #tpu.dot_dimension_numbers<[2], [1], [1], [2], [0, 0, 0, 1, 1, 2], [0], [0]>} : vector<1x16x16xbf16>, vector<1x16x64xbf16>, vector<1x16x64xf32> -> vector<1x16x64xf32>
    %27 = arith.truncf %26 : vector<1x16x64xf32> to vector<1x16x64xbf16>
    %cst_10 = arith.constant dense<0.000000e+00> : vector<1x16x16xf32>
    %28 = tpu.matmul %27, %27, %cst_10 {dimension_numbers = #tpu.dot_dimension_numbers<[2], [2], [1], [1], [0, 0, 0, 1, 1, 1], [0], [0]>} : vector<1x16x64xbf16>, vector<1x16x64xbf16>, vector<1x16x16xf32> -> vector<1x16x16xf32>
    %29 = arith.truncf %28 : vector<1x16x16xf32> to vector<1x16x16xbf16>
    %cst_11 = arith.constant dense<0.000000e+00> : vector<1x16x16xf32>
    %30 = tpu.matmul %29, %29, %cst_11 {dimension_numbers = #tpu.dot_dimension_numbers<[2], [1], [1], [2], [0, 0, 0, 1, 1, 2], [0], [0]>} : vector<1x16x16xbf16>, vector<1x16x16xbf16>, vector<1x16x16xf32> -> vector<1x16x16xf32>
    %cst_12 = arith.constant -4.775000e+00 : f32
    %31 = vector.broadcast %cst_12 : f32 to vector<1x16x16xf32>
    %32 = arith.mulf %31, %28 : vector<1x16x16xf32>
    %cst_13 = arith.constant 2.031500e+00 : f32
    %33 = vector.broadcast %cst_13 : f32 to vector<1x16x16xf32>
    %34 = arith.mulf %33, %30 : vector<1x16x16xf32>
    %35 = arith.addf %32, %34 : vector<1x16x16xf32>
    %36 = arith.addf %35, %15 : vector<1x16x16xf32>
    %37 = arith.truncf %36 : vector<1x16x16xf32> to vector<1x16x16xbf16>
    %cst_14 = arith.constant dense<0.000000e+00> : vector<1x16x64xf32>
    %38 = tpu.matmul %37, %27, %cst_14 {dimension_numbers = #tpu.dot_dimension_numbers<[2], [1], [1], [2], [0, 0, 0, 1, 1, 2], [0], [0]>} : vector<1x16x16xbf16>, vector<1x16x64xbf16>, vector<1x16x64xf32> -> vector<1x16x64xf32>
    %39 = arith.truncf %38 : vector<1x16x64xf32> to vector<1x16x64xbf16>
    %cst_15 = arith.constant dense<0.000000e+00> : vector<1x16x16xf32>
    %40 = tpu.matmul %39, %39, %cst_15 {dimension_numbers = #tpu.dot_dimension_numbers<[2], [2], [1], [1], [0, 0, 0, 1, 1, 1], [0], [0]>} : vector<1x16x64xbf16>, vector<1x16x64xbf16>, vector<1x16x16xf32> -> vector<1x16x16xf32>
    %41 = arith.truncf %40 : vector<1x16x16xf32> to vector<1x16x16xbf16>
    %cst_16 = arith.constant dense<0.000000e+00> : vector<1x16x16xf32>
    %42 = tpu.matmul %41, %41, %cst_16 {dimension_numbers = #tpu.dot_dimension_numbers<[2], [1], [1], [2], [0, 0, 0, 1, 1, 2], [0], [0]>} : vector<1x16x16xbf16>, vector<1x16x16xbf16>, vector<1x16x16xf32> -> vector<1x16x16xf32>
    %cst_17 = arith.constant -4.775000e+00 : f32
    %43 = vector.broadcast %cst_17 : f32 to vector<1x16x16xf32>
    %44 = arith.mulf %43, %40 : vector<1x16x16xf32>
    %cst_18 = arith.constant 2.031500e+00 : f32
    %45 = vector.broadcast %cst_18 : f32 to vector<1x16x16xf32>
    %46 = arith.mulf %45, %42 : vector<1x16x16xf32>
    %47 = arith.addf %44, %46 : vector<1x16x16xf32>
    %48 = arith.addf %47, %15 : vector<1x16x16xf32>
    %49 = arith.truncf %48 : vector<1x16x16xf32> to vector<1x16x16xbf16>
    %cst_19 = arith.constant dense<0.000000e+00> : vector<1x16x64xf32>
    %50 = tpu.matmul %49, %39, %cst_19 {dimension_numbers = #tpu.dot_dimension_numbers<[2], [1], [1], [2], [0, 0, 0, 1, 1, 2], [0], [0]>} : vector<1x16x16xbf16>, vector<1x16x64xbf16>, vector<1x16x64xf32> -> vector<1x16x64xf32>
    %51 = arith.truncf %50 : vector<1x16x64xf32> to vector<1x16x64xbf16>
    %cst_20 = arith.constant dense<0.000000e+00> : vector<1x16x16xf32>
    %52 = tpu.matmul %51, %51, %cst_20 {dimension_numbers = #tpu.dot_dimension_numbers<[2], [2], [1], [1], [0, 0, 0, 1, 1, 1], [0], [0]>} : vector<1x16x64xbf16>, vector<1x16x64xbf16>, vector<1x16x16xf32> -> vector<1x16x16xf32>
    %53 = arith.truncf %52 : vector<1x16x16xf32> to vector<1x16x16xbf16>
    %cst_21 = arith.constant dense<0.000000e+00> : vector<1x16x16xf32>
    %54 = tpu.matmul %53, %53, %cst_21 {dimension_numbers = #tpu.dot_dimension_numbers<[2], [1], [1], [2], [0, 0, 0, 1, 1, 2], [0], [0]>} : vector<1x16x16xbf16>, vector<1x16x16xbf16>, vector<1x16x16xf32> -> vector<1x16x16xf32>
    %cst_22 = arith.constant -4.775000e+00 : f32
    %55 = vector.broadcast %cst_22 : f32 to vector<1x16x16xf32>
    %56 = arith.mulf %55, %52 : vector<1x16x16xf32>
    %cst_23 = arith.constant 2.031500e+00 : f32
    %57 = vector.broadcast %cst_23 : f32 to vector<1x16x16xf32>
    %58 = arith.mulf %57, %54 : vector<1x16x16xf32>
    %59 = arith.addf %56, %58 : vector<1x16x16xf32>
    %60 = arith.addf %59, %15 : vector<1x16x16xf32>
    %61 = arith.truncf %60 : vector<1x16x16xf32> to vector<1x16x16xbf16>
    %cst_24 = arith.constant dense<0.000000e+00> : vector<1x16x64xf32>
    %62 = tpu.matmul %61, %51, %cst_24 {dimension_numbers = #tpu.dot_dimension_numbers<[2], [1], [1], [2], [0, 0, 0, 1, 1, 2], [0], [0]>} : vector<1x16x16xbf16>, vector<1x16x64xbf16>, vector<1x16x64xf32> -> vector<1x16x64xf32>
    %63 = arith.truncf %62 : vector<1x16x64xf32> to vector<1x16x64xbf16>
    %cst_25 = arith.constant dense<0.000000e+00> : vector<1x16x16xf32>
    %64 = tpu.matmul %63, %63, %cst_25 {dimension_numbers = #tpu.dot_dimension_numbers<[2], [2], [1], [1], [0, 0, 0, 1, 1, 1], [0], [0]>} : vector<1x16x64xbf16>, vector<1x16x64xbf16>, vector<1x16x16xf32> -> vector<1x16x16xf32>
    %65 = arith.truncf %64 : vector<1x16x16xf32> to vector<1x16x16xbf16>
    %cst_26 = arith.constant dense<0.000000e+00> : vector<1x16x16xf32>
    %66 = tpu.matmul %65, %65, %cst_26 {dimension_numbers = #tpu.dot_dimension_numbers<[2], [1], [1], [2], [0, 0, 0, 1, 1, 2], [0], [0]>} : vector<1x16x16xbf16>, vector<1x16x16xbf16>, vector<1x16x16xf32> -> vector<1x16x16xf32>
    %cst_27 = arith.constant -4.775000e+00 : f32
    %67 = vector.broadcast %cst_27 : f32 to vector<1x16x16xf32>
    %68 = arith.mulf %67, %64 : vector<1x16x16xf32>
    %cst_28 = arith.constant 2.031500e+00 : f32
    %69 = vector.broadcast %cst_28 : f32 to vector<1x16x16xf32>
    %70 = arith.mulf %69, %66 : vector<1x16x16xf32>
    %71 = arith.addf %68, %70 : vector<1x16x16xf32>
    %72 = arith.addf %71, %15 : vector<1x16x16xf32>
    %cst_29 = arith.constant -1.000000e+00 : f32
    %73 = vector.broadcast %cst_29 : f32 to vector<1x16x16xf32>
    %74 = arith.mulf %73, %72 : vector<1x16x16xf32>
    %75 = arith.truncf %74 : vector<1x16x16xf32> to vector<1x16x16xbf16>
    %cst_30 = arith.constant dense<0.000000e+00> : vector<1x16x64xf32>
    %76 = tpu.matmul %75, %63, %cst_30 {dimension_numbers = #tpu.dot_dimension_numbers<[2], [1], [1], [2], [0, 0, 0, 1, 1, 2], [0], [0]>} : vector<1x16x16xbf16>, vector<1x16x64xbf16>, vector<1x16x64xf32> -> vector<1x16x64xf32>
    %c0_31 = arith.constant 0 : index
    %c0_32 = arith.constant 0 : index
    %c0_33 = arith.constant 0 : index
    %77 = vector.load %arg2[%c0_31, %c0_32, %c0_33] : memref<1x16x64xf32, #tpu.memory_space<vmem>>, vector<1x16x64xf32>
    tpu.vector_store %arg2[%c0_31, %c0_32, %c0_33], %76 {strides = array<i32>} : memref<1x16x64xf32, #tpu.memory_space<vmem>>, vector<1x16x64xf32>,
    return
  }
  func.func @transform_0(%arg0: i32) -> (i32, i32, i32) {
    %c0_i32 = arith.constant 0 : i32
    %c0_i32_0 = arith.constant 0 : i32
    %c0_i32_1 = arith.constant 0 : i32
    return %arg0, %c0_i32, %c0_i32_0 : i32, i32, i32
  }
  func.func @transform_1(%arg0: i32) -> (i32, i32, i32) {
    %c0_i32 = arith.constant 0 : i32
    %c0_i32_0 = arith.constant 0 : i32
    %c0_i32_1 = arith.constant 0 : i32
    return %arg0, %c0_i32, %c0_i32_0 : i32, i32, i32
  }
}

</mosaic_0001>

<llo_original>
// kernel: tpu_custom_call.1
$region0: #{tpu_custom_call.1}
  #allocation0 [shape = 'u32[]', space=smem, size = 0x4, offset = 0x4, fixed_abs, tag = 'smem constant byte address 0x4 - core index']
  #allocation1 [shape = 'u32[144,128]{1,0:T(1,128)}', space=vmem, size = 0x12000, scoped, tag = 'internal scratch']
  %s0 = inlined_call_operand.hbm [shape: f32[2,16,64], index: 0, kind: input, shape index: {}]
  %s1 = inlined_call_operand.hbm [shape: f32[2,16,64], index: 1, kind: output, shape index: {}]
  %s2 = sld [smem:[#allocation0]]
  $region41: #{tpu_custom_call.1} parent=0
    _
  %s4 = ssub.s32 1, %s2
  %s5 = scalar_select 0, %s4, %s2
  $region1: #{tpu_custom_call.1} parent=0
    #allocation2 [shape = 'u8[16384]{0}', space=vmem, size = 0x4000, scoped, tag = 'input window, operand 0']
    #allocation3 [shape = 's32[2]{0}', space=sflag, size = 0x8, scoped, tag = 'scoped memory for tpu_custom_call.1']
    #allocation4 [shape = 's32[2]{0}', space=sflag, size = 0x8, scoped, tag = 'scoped memory for tpu_custom_call.1']
    #allocation5 [shape = 'u8[16384]{0}', space=vmem, size = 0x4000, scoped, tag = 'output window, operand 0']
    %6 = vsyncpa [#allocation3], 0
    %s7 = scalar_lea.sflag [#allocation3], 1
    %8 = vsyncpa %s7, 0
    %9 = vsyncpa [#allocation4], 0
    %s10 = scalar_lea.sflag [#allocation4], 1
    %11 = vsyncpa %s10, 0
    loop: start=0, step=1, limit=4
    $region2: #{tpu_custom_call.1} parent=1 // loop_pre_header
      _
    $region3: #{tpu_custom_call.1} parent=1 // loop_header
      %s13 = sphi 0, %s17
      %p14 = scmp.ge.s32.totalorder %s13, 4
      %s23 = sphi 0, %s25
      %s26 = sphi 0, %s23
      %s27 = sphi 0, %s26
      %s43 = sphi 0, %s27
      %s49 = sphi 0, %s51
      %s52 = sphi 0, %s49
      %s53 = sphi 0, %s52
      %s69 = sphi 0, %s53
    $region4: #{tpu_custom_call.1} parent=1 // loop_header_branch
      %16 = sbr.rel (%p14) target = $region8
    $region5: #{tpu_custom_call.1} parent=1 // loop_body
      %s18 = ssub.s32 %s13, 1
      %s19 = ssub.s32 %s13, 2
      %s20 = sadd.s32 %s13, 1
      %s21 = ssub.s32 %s13, %s20
      %p22 = scmp.eq.s32.totalorder %s21, 0
      %s24 = sadd.s32 %s23, 1
      %s25 = scalar_select %p22, %s23, %s24
      %p28 = pneg %p22
      %p29 = scmp.eq.s32.totalorder %s13, 1
      %p30 = por %p28, %p29
      %p31 = scmp.ne.s32.totalorder %s23, %s26
      %p32 = scmp.eq.s32.totalorder %s13, 0
      %p33 = por %p31, %p32
      %p34 = scmp.ne.s32.totalorder %s23, %s26
      %p35 = scmp.eq.s32.totalorder %s18, 1
      %p36 = por %p34, %p35
      %p37 = scmp.ne.s32.totalorder %s26, %s27
      %p38 = scmp.eq.s32.totalorder %s18, 0
      %p39 = por %p37, %p38
      %p40 = scmp.ne.s32.totalorder %s26, %s27
      %p41 = scmp.eq.s32.totalorder %s19, 1
      %p42 = por %p40, %p41
      %p44 = scmp.ne.s32.totalorder %s27, %s43
      %p45 = scmp.eq.s32.totalorder %s19, 0
      %p46 = por %p44, %p45
      %s47 = ssub.s32 %s13, %s20
      %p48 = scmp.eq.s32.totalorder %s47, 0
      %s50 = sadd.s32 %s49, 1
      %s51 = scalar_select %p48, %s49, %s50
      %p54 = pneg %p48
      %p55 = scmp.eq.s32.totalorder %s13, 1
      %p56 = por %p54, %p55
      %p57 = scmp.ne.s32.totalorder %s49, %s52
      %p58 = scmp.eq.s32.totalorder %s13, 0
      %p59 = por %p57, %p58
      %p60 = scmp.ne.s32.totalorder %s49, %s52
      %p61 = scmp.eq.s32.totalorder %s18, 1
      %p62 = por %p60, %p61
      %p63 = scmp.ne.s32.totalorder %s52, %s53
      %p64 = scmp.eq.s32.totalorder %s18, 0
      %p65 = por %p63, %p64
      %p66 = scmp.ne.s32.totalorder %s52, %s53
      %p67 = scmp.eq.s32.totalorder %s19, 1
      %p68 = por %p66, %p67
      %p70 = scmp.ne.s32.totalorder %s53, %s69
      %p71 = scmp.eq.s32.totalorder %s19, 0
      %p72 = por %p70, %p71
      %p73 = scmp.le.s32.totalorder 1, %s13
      %p74 = scmp.lt.s32.totalorder %s13, 3
      %p75 = pnand %p73, %p74
      %p76 = pneg %p75
      // Predicated region
      $region9: #{tpu_custom_call.1} parent=5 // pred_check
        _
      $region10: #{tpu_custom_call.1} parent=5 // pred_check_branch
        %78 = sbr.rel (%p75) target = $region12
      $region11: #{tpu_custom_call.1} parent=5 // pred_region
        %s79 = ssub.s32 %s13, 1
      $region12: #{tpu_custom_call.1} parent=5 // pred_fallthru
        _
      %p80 = scmp.lt.s32.totalorder %s13, 2
      // Predicated region
      $region13: #{tpu_custom_call.1} parent=5 // pred_check
        %p81 = pneg %p80
      $region14: #{tpu_custom_call.1} parent=5 // pred_check_branch
        %83 = sbr.rel (%p81) target = $region16
      $region15: #{tpu_custom_call.1} parent=5 // pred_region
        // Predicated region
        $region17: #{tpu_custom_call.1} parent=15 // pred_check
          %p84 = pneg %p33
        $region18: #{tpu_custom_call.1} parent=15 // pred_check_branch
          %86 = sbr.rel (%p84) target = $region20
        $region19: #{tpu_custom_call.1} parent=15 // pred_region
          %s87 = sand.u32 %s23, 1
          %s88 = scalar_lea.sflag [#allocation3], %s87
          %s89 = sand.u32 %s23, 1
          %s90 = smul.addr %s89, 16
          %s91 = scalar_lea.vmem [#allocation2], %s90
          %s93 = ssub.s32 256, 256
          %94 = vsyncadd %s88, %s93
          %s95 = smul.addr %s13, 2
          %s96 = smul.addr %s95, 128
          %s97 = scalar_lea.hbm %s0, %s96
          %s98 = sshll.u32 %s91, 4
          %s99 = int_to_ptr.vmem [resolvable:$true] %s98
          %104 = dma.hbm_to_vmem [thread:$0]  %s97, 256, %s99, %s88, 128, 128, 8
        $region20: #{tpu_custom_call.1} parent=15 // pred_fallthru
          _
      $region16: #{tpu_custom_call.1} parent=5 // pred_fallthru
        _
      %p105 = scmp.le.s32.totalorder 1, %s13
      %p106 = scmp.lt.s32.totalorder %s13, 3
      %p107 = pnand %p105, %p106
      %p108 = pneg %p107
      // Predicated region
      $region21: #{tpu_custom_call.1} parent=5 // pred_check
        _
      $region22: #{tpu_custom_call.1} parent=5 // pred_check_branch
        %110 = sbr.rel (%p107) target = $region24
      $region23: #{tpu_custom_call.1} parent=5 // pred_region
        %s111 = ssub.s32 %s13, 1
        %s112 = sand.u32 %s26, 1
        %s113 = scalar_lea.sflag [#allocation3], %s112
        %s114 = sand.u32 %s26, 1
        %s115 = smul.addr %s114, 16
        %s116 = scalar_lea.vmem [#allocation2], %s115
        // Predicated region
        $region25: #{tpu_custom_call.1} parent=23 // pred_check
          %p117 = pneg %p39
        $region26: #{tpu_custom_call.1} parent=23 // pred_check_branch
          %119 = sbr.rel (%p117) target = $region28
        $region27: #{tpu_custom_call.1} parent=23 // pred_region
          %120 = dma.done %s113, 256
        $region28: #{tpu_custom_call.1} parent=23 // pred_fallthru
          _
        %s121 = sand.u32 %s26, 1
        %s122 = scalar_lea.sflag [#allocation3], %s121
        %s123 = sand.u32 %s26, 1
        %s124 = smul.addr %s123, 16
        %s125 = scalar_lea.vmem [#allocation2], %s124
        %p126 = pneg %p39
        %p127 = pneg %p36
        %p128 = pneg %p65
        %p129 = pneg %p62
        %s130 = sand.u32 %s52, 1
        %s131 = scalar_lea.sflag [#allocation4], %s130
        %s132 = sand.u32 %s52, 1
        %s133 = smul.addr %s132, 16
        %s134 = scalar_lea.vmem [#allocation5], %s133
        %v136 = vld [vmem:[%s116] sm:$0xff]
        %v137 = vld [vmem:[%s116 + $0x8] sm:$0xff]
        %v138 = vmul.f32 %v136, %v136
        %v139 = vmul.f32 %v137, %v137
        %vm140 = vcmask 523264
        %v141 = vsel %vm140, %v138, 0.0
        %v142 = vsel %vm140, %v139, 0.0
        %v143 = vadd.f32 %v141, %v142
        %144 = vadd.xlane.f32.xlu0 %v143
        %v145 = vpop.xlane.xlu0 %144
        %v146 = vrot.slane %v145, 4
        %v147 = vadd.f32 %v145, %v146
        %v148 = vrot.slane %v147, 2
        %v149 = vadd.f32 %v147, %v148
        %v150 = vrot.slane %v149, 1
        %v151 = vadd.f32 %v149, %v150
        %v152 = vadd.f32 %v151, 1e-07
        %v153 = vrsqrt.pop %v152
        %v154 = vmul.f32 %v136, %v153
        %v155 = vmul.f32 %v137, %v153
        %v156 = vpack.c.bf16 %v155, %v154
        %v157 = vlaneseq
        %v158 = vshrl.u32 %v157, 7
        %v159 = vadd.s32 %v158, 8
        %v160 = vlaneseq
        %v161 = vand.u32 %v160, 127
        %vm162 = vcmp.eq.s32.totalorder %v158, %v161
        %vm163 = vcmp.eq.s32.totalorder %v159, %v161
        %v164 = vsel %vm162, 3.4445, 0.0
        %v165 = vsel %vm163, 3.4445, 0.0
        %v167 = vsel %vm140, %v156, 0
        %169 = vmatprep.subr.bf16.mxu0 0
        %170 = vmatpush1.bf16.xpose.msra.mxu0 %v167
        %171 = vmatprep.subr.bf16.mxu0 0
        %172 = vmatpush1.bf16.xpose.msra.mxu0 0
        %173 = vmatprep.subr.bf16.mxu0 0
        %174 = vmatpush1.bf16.xpose.msra.mxu0 0
        %175 = vmatprep.subr.bf16.mxu0 0
        %176 = vmatpush1.bf16.xpose.msra.mxu0 0
        %177 = vmatprep.subr.bf16.mxu0 0
        %178 = vmatpush1.bf16.xpose.msra.mxu0 0
        %179 = vmatprep.subr.bf16.mxu0 0
        %180 = vmatpush1.bf16.xpose.msra.mxu0 0
        %181 = vmatprep.subr.bf16.mxu0 0
        %182 = vmatpush1.bf16.xpose.msra.mxu0 0
        %183 = vmatprep.subr.bf16.mxu0 0
        %184 = vmatpush1.bf16.xpose.msra.mxu0 0
        %185 = vmatprep.subr.bf16.mxu0 0
        %186 = vmatpush1.bf16.xpose.msra.mxu0 0
        %187 = vmatprep.subr.bf16.mxu0 0
        %188 = vmatpush1.bf16.xpose.msra.mxu0 0
        %189 = vmatprep.subr.bf16.mxu0 0
        %190 = vmatpush1.bf16.xpose.msra.mxu0 0
        %191 = vmatprep.subr.bf16.mxu0 0
        %192 = vmatpush1.bf16.xpose.msra.mxu0 0
        %193 = vmatprep.subr.bf16.mxu0 0
        %194 = vmatpush1.bf16.xpose.msra.mxu0 0
        %195 = vmatprep.subr.bf16.mxu0 0
        %196 = vmatpush1.bf16.xpose.msra.mxu0 0
        %197 = vmatprep.subr.bf16.mxu0 0
        %198 = vmatpush1.bf16.xpose.msra.mxu0 0
        %199 = vmatprep.subr.bf16.mxu0 0
        %200 = vmatpush1.bf16.xpose.msra.mxu0 0
        %201 = vmatprep.mubr.bf16.mxu0 0
        %202 = vmatmul.mubr.bf16.gmra.mrb[0].mxu0 %v167
        %v203 = vpop.f32.mrb[0].mxu0
        %v204 = vadd.f32 0.0, %v203
        %v205 = vpop.f32.mrb[0].mxu0
        %v206 = vpop.f32.mrb[0].mxu0
        %v207 = vadd.f32 0.0, %v206
        %v208 = vpop.f32.mrb[0].mxu0
        %209 = vdwg.mxu0
        %v210 = vpack.c.bf16 %v207, %v204
        %vm211 = vcmask 130048
        %v213 = vsel %vm211, %v210, 0
        %215 = vmatprep.subr.bf16.mxu0 0
        %216 = vmatpush1.bf16.msra.mxu0 %v210
        %217 = vmatprep.subr.bf16.mxu0 0
        %218 = vmatpush1.bf16.msra.mxu0 0
        %219 = vmatprep.subr.bf16.mxu0 0
        %220 = vmatpush1.bf16.msra.mxu0 0
        %221 = vmatprep.subr.bf16.mxu0 0
        %222 = vmatpush1.bf16.msra.mxu0 0
        %223 = vmatprep.subr.bf16.mxu0 0
        %224 = vmatpush1.bf16.msra.mxu0 0
        %225 = vmatprep.subr.bf16.mxu0 0
        %226 = vmatpush1.bf16.msra.mxu0 0
        %227 = vmatprep.subr.bf16.mxu0 0
        %228 = vmatpush1.bf16.msra.mxu0 0
        %229 = vmatprep.subr.bf16.mxu0 0
        %230 = vmatpush1.bf16.msra.mxu0 0
        %231 = vmatprep.subr.bf16.mxu0 0
        %232 = vmatpush1.bf16.msra.mxu0 0
        %233 = vmatprep.subr.bf16.mxu0 0
        %234 = vmatpush1.bf16.msra.mxu0 0
        %235 = vmatprep.subr.bf16.mxu0 0
        %236 = vmatpush1.bf16.msra.mxu0 0
        %237 = vmatprep.subr.bf16.mxu0 0
        %238 = vmatpush1.bf16.msra.mxu0 0
        %239 = vmatprep.subr.bf16.mxu0 0
        %240 = vmatpush1.bf16.msra.mxu0 0
        %241 = vmatprep.subr.bf16.mxu0 0
        %242 = vmatpush1.bf16.msra.mxu0 0
        %243 = vmatprep.subr.bf16.mxu0 0
        %244 = vmatpush1.bf16.msra.mxu0 0
        %245 = vmatprep.subr.bf16.mxu0 0
        %246 = vmatpush1.bf16.msra.mxu0 0
        %247 = vmatprep.mubr.bf16.mxu0 0
        %248 = vmatmul.mubr.bf16.gmra.mrb[0].mxu0 %v213
        %v249 = vpop.f32.mrb[0].mxu0
        %v250 = vadd.f32 0.0, %v249
        %v251 = vpop.f32.mrb[0].mxu0
        %v252 = vpop.f32.mrb[0].mxu0
        %v253 = vadd.f32 0.0, %v252
        %v254 = vpop.f32.mrb[0].mxu0
        %255 = vdwg.mxu0
        %v256 = vmul.f32 %v204, -4.775
        %v257 = vmul.f32 %v207, -4.775
        %v258 = vmul.f32 %v250, 2.0315
        %v259 = vmul.f32 %v253, 2.0315
        %v260 = vadd.f32 %v256, %v258
        %v261 = vadd.f32 %v257, %v259
        %v262 = vadd.f32 %v260, %v164
        %v263 = vadd.f32 %v261, %v165
        %v264 = vpack.c.bf16 %v263, %v262
        %v266 = vsel %vm211, %v264, 0
        %268 = vmatprep.subr.bf16.mxu0 0
        %269 = vmatpush1.bf16.msra.mxu0 %v156
        %270 = vmatprep.subr.bf16.mxu0 0
        %271 = vmatpush1.bf16.msra.mxu0 0
        %272 = vmatprep.subr.bf16.mxu0 0
        %273 = vmatpush1.bf16.msra.mxu0 0
        %274 = vmatprep.subr.bf16.mxu0 0
        %275 = vmatpush1.bf16.msra.mxu0 0
        %276 = vmatprep.subr.bf16.mxu0 0
        %277 = vmatpush1.bf16.msra.mxu0 0
        %278 = vmatprep.subr.bf16.mxu0 0
        %279 = vmatpush1.bf16.msra.mxu0 0
        %280 = vmatprep.subr.bf16.mxu0 0
        %281 = vmatpush1.bf16.msra.mxu0 0
        %282 = vmatprep.subr.bf16.mxu0 0
        %283 = vmatpush1.bf16.msra.mxu0 0
        %284 = vmatprep.subr.bf16.mxu0 0
        %285 = vmatpush1.bf16.msra.mxu0 0
        %286 = vmatprep.subr.bf16.mxu0 0
        %287 = vmatpush1.bf16.msra.mxu0 0
        %288 = vmatprep.subr.bf16.mxu0 0
        %289 = vmatpush1.bf16.msra.mxu0 0
        %290 = vmatprep.subr.bf16.mxu0 0
        %291 = vmatpush1.bf16.msra.mxu0 0
        %292 = vmatprep.subr.bf16.mxu0 0
        %293 = vmatpush1.bf16.msra.mxu0 0
        %294 = vmatprep.subr.bf16.mxu0 0
        %295 = vmatpush1.bf16.msra.mxu0 0
        %296 = vmatprep.subr.bf16.mxu0 0
        %297 = vmatpush1.bf16.msra.mxu0 0
        %298 = vmatprep.subr.bf16.mxu0 0
        %299 = vmatpush1.bf16.msra.mxu0 0
        %300 = vmatprep.mubr.bf16.mxu0 0
        %301 = vmatmul.mubr.bf16.gmra.mrb[0].mxu0 %v266
        %v302 = vpop.f32.mrb[0].mxu0
        %v303 = vadd.f32 0.0, %v302
        %v304 = vpop.f32.mrb[0].mxu0
        %v305 = vpop.f32.mrb[0].mxu0
        %v306 = vadd.f32 0.0, %v305
        %v307 = vpop.f32.mrb[0].mxu0
        %308 = vdwg.mxu0
        %v309 = vpack.c.bf16 %v306, %v303
        %v311 = vsel %vm140, %v309, 0
        %313 = vmatprep.subr.bf16.mxu0 0
        %314 = vmatpush1.bf16.xpose.msra.mxu0 %v311
        %315 = vmatprep.subr.bf16.mxu0 0
        %316 = vmatpush1.bf16.xpose.msra.mxu0 0
        %317 = vmatprep.subr.bf16.mxu0 0
        %318 = vmatpush1.bf16.xpose.msra.mxu0 0
        %319 = vmatprep.subr.bf16.mxu0 0
        %320 = vmatpush1.bf16.xpose.msra.mxu0 0
        %321 = vmatprep.subr.bf16.mxu0 0
        %322 = vmatpush1.bf16.xpose.msra.mxu0 0
        %323 = vmatprep.subr.bf16.mxu0 0
        %324 = vmatpush1.bf16.xpose.msra.mxu0 0
        %325 = vmatprep.subr.bf16.mxu0 0
        %326 = vmatpush1.bf16.xpose.msra.mxu0 0
        %327 = vmatprep.subr.bf16.mxu0 0
        %328 = vmatpush1.bf16.xpose.msra.mxu0 0
        %329 = vmatprep.subr.bf16.mxu0 0
        %330 = vmatpush1.bf16.xpose.msra.mxu0 0
        %331 = vmatprep.subr.bf16.mxu0 0
        %332 = vmatpush1.bf16.xpose.msra.mxu0 0
        %333 = vmatprep.subr.bf16.mxu0 0
        %334 = vmatpush1.bf16.xpose.msra.mxu0 0
        %335 = vmatprep.subr.bf16.mxu0 0
        %336 = vmatpush1.bf16.xpose.msra.mxu0 0
        %337 = vmatprep.subr.bf16.mxu0 0
        %338 = vmatpush1.bf16.xpose.msra.mxu0 0
        %339 = vmatprep.subr.bf16.mxu0 0
        %340 = vmatpush1.bf16.xpose.msra.mxu0 0
        %341 = vmatprep.subr.bf16.mxu0 0
        %342 = vmatpush1.bf16.xpose.msra.mxu0 0
        %343 = vmatprep.subr.bf16.mxu0 0
        %344 = vmatpush1.bf16.xpose.msra.mxu0 0
        %345 = vmatprep.mubr.bf16.mxu0 0
        %346 = vmatmul.mubr.bf16.gmra.mrb[0].mxu0 %v311
        %v347 = vpop.f32.mrb[0].mxu0
        %v348 = vadd.f32 0.0, %v347
        %v349 = vpop.f32.mrb[0].mxu0
        %v350 = vpop.f32.mrb[0].mxu0
        %v351 = vadd.f32 0.0, %v350
        %v352 = vpop.f32.mrb[0].mxu0
        %353 = vdwg.mxu0
        %v354 = vpack.c.bf16 %v351, %v348
        %v356 = vsel %vm211, %v354, 0
        %358 = vmatprep.subr.bf16.mxu0 0
        %359 = vmatpush1.bf16.msra.mxu0 %v354
        %360 = vmatprep.subr.bf16.mxu0 0
        %361 = vmatpush1.bf16.msra.mxu0 0
        %362 = vmatprep.subr.bf16.mxu0 0
        %363 = vmatpush1.bf16.msra.mxu0 0
        %364 = vmatprep.subr.bf16.mxu0 0
        %365 = vmatpush1.bf16.msra.mxu0 0
        %366 = vmatprep.subr.bf16.mxu0 0
        %367 = vmatpush1.bf16.msra.mxu0 0
        %368 = vmatprep.subr.bf16.mxu0 0
        %369 = vmatpush1.bf16.msra.mxu0 0
        %370 = vmatprep.subr.bf16.mxu0 0
        %371 = vmatpush1.bf16.msra.mxu0 0
        %372 = vmatprep.subr.bf16.mxu0 0
        %373 = vmatpush1.bf16.msra.mxu0 0
        %374 = vmatprep.subr.bf16.mxu0 0
        %375 = vmatpush1.bf16.msra.mxu0 0
        %376 = vmatprep.subr.bf16.mxu0 0
        %377 = vmatpush1.bf16.msra.mxu0 0
        %378 = vmatprep.subr.bf16.mxu0 0
        %379 = vmatpush1.bf16.msra.mxu0 0
        %380 = vmatprep.subr.bf16.mxu0 0
        %381 = vmatpush1.bf16.msra.mxu0 0
        %382 = vmatprep.subr.bf16.mxu0 0
        %383 = vmatpush1.bf16.msra.mxu0 0
        %384 = vmatprep.subr.bf16.mxu0 0
        %385 = vmatpush1.bf16.msra.mxu0 0
        %386 = vmatprep.subr.bf16.mxu0 0
        %387 = vmatpush1.bf16.msra.mxu0 0
        %388 = vmatprep.subr.bf16.mxu0 0
        %389 = vmatpush1.bf16.msra.mxu0 0
        %390 = vmatprep.mubr.bf16.mxu0 0
        %391 = vmatmul.mubr.bf16.gmra.mrb[0].mxu0 %v356
        %v392 = vpop.f32.mrb[0].mxu0
        %v393 = vadd.f32 0.0, %v392
        %v394 = vpop.f32.mrb[0].mxu0
        %v395 = vpop.f32.mrb[0].mxu0
        %v396 = vadd.f32 0.0, %v395
        %v397 = vpop.f32.mrb[0].mxu0
        %398 = vdwg.mxu0
        %v399 = vmul.f32 %v348, -4.775
        %v400 = vmul.f32 %v351, -4.775
        %v401 = vmul.f32 %v393, 2.0315
        %v402 = vmul.f32 %v396, 2.0315
        %v403 = vadd.f32 %v399, %v401
        %v404 = vadd.f32 %v400, %v402
        %v405 = vadd.f32 %v403, %v164
        %v406 = vadd.f32 %v404, %v165
        %v407 = vpack.c.bf16 %v406, %v405
        %v409 = vsel %vm211, %v407, 0
        %411 = vmatprep.subr.bf16.mxu0 0
        %412 = vmatpush1.bf16.msra.mxu0 %v309
        %413 = vmatprep.subr.bf16.mxu0 0
        %414 = vmatpush1.bf16.msra.mxu0 0
        %415 = vmatprep.subr.bf16.mxu0 0
        %416 = vmatpush1.bf16.msra.mxu0 0
        %417 = vmatprep.subr.bf16.mxu0 0
        %418 = vmatpush1.bf16.msra.mxu0 0
        %419 = vmatprep.subr.bf16.mxu0 0
        %420 = vmatpush1.bf16.msra.mxu0 0
        %421 = vmatprep.subr.bf16.mxu0 0
        %422 = vmatpush1.bf16.msra.mxu0 0
        %423 = vmatprep.subr.bf16.mxu0 0
        %424 = vmatpush1.bf16.msra.mxu0 0
        %425 = vmatprep.subr.bf16.mxu0 0
        %426 = vmatpush1.bf16.msra.mxu0 0
        %427 = vmatprep.subr.bf16.mxu0 0
        %428 = vmatpush1.bf16.msra.mxu0 0
        %429 = vmatprep.subr.bf16.mxu0 0
        %430 = vmatpush1.bf16.msra.mxu0 0
        %431 = vmatprep.subr.bf16.mxu0 0
        %432 = vmatpush1.bf16.msra.mxu0 0
        %433 = vmatprep.subr.bf16.mxu0 0
        %434 = vmatpush1.bf16.msra.mxu0 0
        %435 = vmatprep.subr.bf16.mxu0 0
        %436 = vmatpush1.bf16.msra.mxu0 0
        %437 = vmatprep.subr.bf16.mxu0 0
        %438 = vmatpush1.bf16.msra.mxu0 0
        %439 = vmatprep.subr.bf16.mxu0 0
        %440 = vmatpush1.bf16.msra.mxu0 0
        %441 = vmatprep.subr.bf16.mxu0 0
        %442 = vmatpush1.bf16.msra.mxu0 0
        %443 = vmatprep.mubr.bf16.mxu0 0
        %444 = vmatmul.mubr.bf16.gmra.mrb[0].mxu0 %v409
        %v445 = vpop.f32.mrb[0].mxu0
        %v446 = vadd.f32 0.0, %v445
        %v447 = vpop.f32.mrb[0].mxu0
        %v448 = vpop.f32.mrb[0].mxu0
        %v449 = vadd.f32 0.0, %v448
        %v450 = vpop.f32.mrb[0].mxu0
        %451 = vdwg.mxu0
        %v452 = vpack.c.bf16 %v449, %v446
        %v454 = vsel %vm140, %v452, 0
        %456 = vmatprep.subr.bf16.mxu0 0
        %457 = vmatpush1.bf16.xpose.msra.mxu0 %v454
        %458 = vmatprep.subr.bf16.mxu0 0
        %459 = vmatpush1.bf16.xpose.msra.mxu0 0
        %460 = vmatprep.subr.bf16.mxu0 0
        %461 = vmatpush1.bf16.xpose.msra.mxu0 0
        %462 = vmatprep.subr.bf16.mxu0 0
        %463 = vmatpush1.bf16.xpose.msra.mxu0 0
        %464 = vmatprep.subr.bf16.mxu0 0
        %465 = vmatpush1.bf16.xpose.msra.mxu0 0
        %466 = vmatprep.subr.bf16.mxu0 0
        %467 = vmatpush1.bf16.xpose.msra.mxu0 0
        %468 = vmatprep.subr.bf16.mxu0 0
        %469 = vmatpush1.bf16.xpose.msra.mxu0 0
        %470 = vmatprep.subr.bf16.mxu0 0
        %471 = vmatpush1.bf16.xpose.msra.mxu0 0
        %472 = vmatprep.subr.bf16.mxu0 0
        %473 = vmatpush1.bf16.xpose.msra.mxu0 0
        %474 = vmatprep.subr.bf16.mxu0 0
        %475 = vmatpush1.bf16.xpose.msra.mxu0 0
        %476 = vmatprep.subr.bf16.mxu0 0
        %477 = vmatpush1.bf16.xpose.msra.mxu0 0
        %478 = vmatprep.subr.bf16.mxu0 0
        %479 = vmatpush1.bf16.xpose.msra.mxu0 0
        %480 = vmatprep.subr.bf16.mxu0 0
        %481 = vmatpush1.bf16.xpose.msra.mxu0 0
        %482 = vmatprep.subr.bf16.mxu0 0
        %483 = vmatpush1.bf16.xpose.msra.mxu0 0
        %484 = vmatprep.subr.bf16.mxu0 0
        %485 = vmatpush1.bf16.xpose.msra.mxu0 0
        %486 = vmatprep.subr.bf16.mxu0 0
        %487 = vmatpush1.bf16.xpose.msra.mxu0 0
        %488 = vmatprep.mubr.bf16.mxu0 0
        %489 = vmatmul.mubr.bf16.gmra.mrb[0].mxu0 %v454
        %v490 = vpop.f32.mrb[0].mxu0
        %v491 = vadd.f32 0.0, %v490
        %v492 = vpop.f32.mrb[0].mxu0
        %v493 = vpop.f32.mrb[0].mxu0
        %v494 = vadd.f32 0.0, %v493
        %v495 = vpop.f32.mrb[0].mxu0
        %496 = vdwg.mxu0
        %v497 = vpack.c.bf16 %v494, %v491
        %v499 = vsel %vm211, %v497, 0
        %501 = vmatprep.subr.bf16.mxu0 0
        %502 = vmatpush1.bf16.msra.mxu0 %v497
        %503 = vmatprep.subr.bf16.mxu0 0
        %504 = vmatpush1.bf16.msra.mxu0 0
        %505 = vmatprep.subr.bf16.mxu0 0
        %506 = vmatpush1.bf16.msra.mxu0 0
        %507 = vmatprep.subr.bf16.mxu0 0
        %508 = vmatpush1.bf16.msra.mxu0 0
        %509 = vmatprep.subr.bf16.mxu0 0
        %510 = vmatpush1.bf16.msra.mxu0 0
        %511 = vmatprep.subr.bf16.mxu0 0
        %512 = vmatpush1.bf16.msra.mxu0 0
        %513 = vmatprep.subr.bf16.mxu0 0
        %514 = vmatpush1.bf16.msra.mxu0 0
        %515 = vmatprep.subr.bf16.mxu0 0
        %516 = vmatpush1.bf16.msra.mxu0 0
        %517 = vmatprep.subr.bf16.mxu0 0
        %518 = vmatpush1.bf16.msra.mxu0 0
        %519 = vmatprep.subr.bf16.mxu0 0
        %520 = vmatpush1.bf16.msra.mxu0 0
        %521 = vmatprep.subr.bf16.mxu0 0
        %522 = vmatpush1.bf16.msra.mxu0 0
        %523 = vmatprep.subr.bf16.mxu0 0
        %524 = vmatpush1.bf16.msra.mxu0 0
        %525 = vmatprep.subr.bf16.mxu0 0
        %526 = vmatpush1.bf16.msra.mxu0 0
        %527 = vmatprep.subr.bf16.mxu0 0
        %528 = vmatpush1.bf16.msra.mxu0 0
        %529 = vmatprep.subr.bf16.mxu0 0
        %530 = vmatpush1.bf16.msra.mxu0 0
        %531 = vmatprep.subr.bf16.mxu0 0
        %532 = vmatpush1.bf16.msra.mxu0 0
        %533 = vmatprep.mubr.bf16.mxu0 0
        %534 = vmatmul.mubr.bf16.gmra.mrb[0].mxu0 %v499
        %v535 = vpop.f32.mrb[0].mxu0
        %v536 = vadd.f32 0.0, %v535
        %v537 = vpop.f32.mrb[0].mxu0
        %v538 = vpop.f32.mrb[0].mxu0
        %v539 = vadd.f32 0.0, %v538
        %v540 = vpop.f32.mrb[0].mxu0
        %541 = vdwg.mxu0
        %v542 = vmul.f32 %v491, -4.775
        %v543 = vmul.f32 %v494, -4.775
        %v544 = vmul.f32 %v536, 2.0315
        %v545 = vmul.f32 %v539, 2.0315
        %v546 = vadd.f32 %v542, %v544
        %v547 = vadd.f32 %v543, %v545
        %v548 = vadd.f32 %v546, %v164
        %v549 = vadd.f32 %v547, %v165
        %v550 = vpack.c.bf16 %v549, %v548
        %v552 = vsel %vm211, %v550, 0
        %554 = vmatprep.subr.bf16.mxu0 0
        %555 = vmatpush1.bf16.msra.mxu0 %v452
        %556 = vmatprep.subr.bf16.mxu0 0
        %557 = vmatpush1.bf16.msra.mxu0 0
        %558 = vmatprep.subr.bf16.mxu0 0
        %559 = vmatpush1.bf16.msra.mxu0 0
        %560 = vmatprep.subr.bf16.mxu0 0
        %561 = vmatpush1.bf16.msra.mxu0 0
        %562 = vmatprep.subr.bf16.mxu0 0
        %563 = vmatpush1.bf16.msra.mxu0 0
        %564 = vmatprep.subr.bf16.mxu0 0
        %565 = vmatpush1.bf16.msra.mxu0 0
        %566 = vmatprep.subr.bf16.mxu0 0
        %567 = vmatpush1.bf16.msra.mxu0 0
        %568 = vmatprep.subr.bf16.mxu0 0
        %569 = vmatpush1.bf16.msra.mxu0 0
        %570 = vmatprep.subr.bf16.mxu0 0
        %571 = vmatpush1.bf16.msra.mxu0 0
        %572 = vmatprep.subr.bf16.mxu0 0
        %573 = vmatpush1.bf16.msra.mxu0 0
        %574 = vmatprep.subr.bf16.mxu0 0
        %575 = vmatpush1.bf16.msra.mxu0 0
        %576 = vmatprep.subr.bf16.mxu0 0
        %577 = vmatpush1.bf16.msra.mxu0 0
        %578 = vmatprep.subr.bf16.mxu0 0
        %579 = vmatpush1.bf16.msra.mxu0 0
        %580 = vmatprep.subr.bf16.mxu0 0
        %581 = vmatpush1.bf16.msra.mxu0 0
        %582 = vmatprep.subr.bf16.mxu0 0
        %583 = vmatpush1.bf16.msra.mxu0 0
        %584 = vmatprep.subr.bf16.mxu0 0
        %585 = vmatpush1.bf16.msra.mxu0 0
        %586 = vmatprep.mubr.bf16.mxu0 0
        %587 = vmatmul.mubr.bf16.gmra.mrb[0].mxu0 %v552
        %v588 = vpop.f32.mrb[0].mxu0
        %v589 = vadd.f32 0.0, %v588
        %v590 = vpop.f32.mrb[0].mxu0
        %v591 = vpop.f32.mrb[0].mxu0
        %v592 = vadd.f32 0.0, %v591
        %v593 = vpop.f32.mrb[0].mxu0
        %594 = vdwg.mxu0
        %v595 = vpack.c.bf16 %v592, %v589
        %v597 = vsel %vm140, %v595, 0
        %599 = vmatprep.subr.bf16.mxu0 0
        %600 = vmatpush1.bf16.xpose.msra.mxu0 %v597
        %601 = vmatprep.subr.bf16.mxu0 0
        %602 = vmatpush1.bf16.xpose.msra.mxu0 0
        %603 = vmatprep.subr.bf16.mxu0 0
        %604 = vmatpush1.bf16.xpose.msra.mxu0 0
        %605 = vmatprep.subr.bf16.mxu0 0
        %606 = vmatpush1.bf16.xpose.msra.mxu0 0
        %607 = vmatprep.subr.bf16.mxu0 0
        %608 = vmatpush1.bf16.xpose.msra.mxu0 0
        %609 = vmatprep.subr.bf16.mxu0 0
        %610 = vmatpush1.bf16.xpose.msra.mxu0 0
        %611 = vmatprep.subr.bf16.mxu0 0
        %612 = vmatpush1.bf16.xpose.msra.mxu0 0
        %613 = vmatprep.subr.bf16.mxu0 0
        %614 = vmatpush1.bf16.xpose.msra.mxu0 0
        %615 = vmatprep.subr.bf16.mxu0 0
        %616 = vmatpush1.bf16.xpose.msra.mxu0 0
        %617 = vmatprep.subr.bf16.mxu0 0
        %618 = vmatpush1.bf16.xpose.msra.mxu0 0
        %619 = vmatprep.subr.bf16.mxu0 0
        %620 = vmatpush1.bf16.xpose.msra.mxu0 0
        %621 = vmatprep.subr.bf16.mxu0 0
        %622 = vmatpush1.bf16.xpose.msra.mxu0 0
        %623 = vmatprep.subr.bf16.mxu0 0
        %624 = vmatpush1.bf16.xpose.msra.mxu0 0
        %625 = vmatprep.subr.bf16.mxu0 0
        %626 = vmatpush1.bf16.xpose.msra.mxu0 0
        %627 = vmatprep.subr.bf16.mxu0 0
        %628 = vmatpush1.bf16.xpose.msra.mxu0 0
        %629 = vmatprep.subr.bf16.mxu0 0
        %630 = vmatpush1.bf16.xpose.msra.mxu0 0
        %631 = vmatprep.mubr.bf16.mxu0 0
        %632 = vmatmul.mubr.bf16.gmra.mrb[0].mxu0 %v597
        %v633 = vpop.f32.mrb[0].mxu0
        %v634 = vadd.f32 0.0, %v633
        %v635 = vpop.f32.mrb[0].mxu0
        %v636 = vpop.f32.mrb[0].mxu0
        %v637 = vadd.f32 0.0, %v636
        %v638 = vpop.f32.mrb[0].mxu0
        %639 = vdwg.mxu0
        %v640 = vpack.c.bf16 %v637, %v634
        %v642 = vsel %vm211, %v640, 0
        %644 = vmatprep.subr.bf16.mxu0 0
        %645 = vmatpush1.bf16.msra.mxu0 %v640
        %646 = vmatprep.subr.bf16.mxu0 0
        %647 = vmatpush1.bf16.msra.mxu0 0
        %648 = vmatprep.subr.bf16.mxu0 0
        %649 = vmatpush1.bf16.msra.mxu0 0
        %650 = vmatprep.subr.bf16.mxu0 0
        %651 = vmatpush1.bf16.msra.mxu0 0
        %652 = vmatprep.subr.bf16.mxu0 0
        %653 = vmatpush1.bf16.msra.mxu0 0
        %654 = vmatprep.subr.bf16.mxu0 0
        %655 = vmatpush1.bf16.msra.mxu0 0
        %656 = vmatprep.subr.bf16.mxu0 0
        %657 = vmatpush1.bf16.msra.mxu0 0
        %658 = vmatprep.subr.bf16.mxu0 0
        %659 = vmatpush1.bf16.msra.mxu0 0
        %660 = vmatprep.subr.bf16.mxu0 0
        %661 = vmatpush1.bf16.msra.mxu0 0
        %662 = vmatprep.subr.bf16.mxu0 0
        %663 = vmatpush1.bf16.msra.mxu0 0
        %664 = vmatprep.subr.bf16.mxu0 0
        %665 = vmatpush1.bf16.msra.mxu0 0
        %666 = vmatprep.subr.bf16.mxu0 0
        %667 = vmatpush1.bf16.msra.mxu0 0
        %668 = vmatprep.subr.bf16.mxu0 0
        %669 = vmatpush1.bf16.msra.mxu0 0
        %670 = vmatprep.subr.bf16.mxu0 0
        %671 = vmatpush1.bf16.msra.mxu0 0
        %672 = vmatprep.subr.bf16.mxu0 0
        %673 = vmatpush1.bf16.msra.mxu0 0
        %674 = vmatprep.subr.bf16.mxu0 0
        %675 = vmatpush1.bf16.msra.mxu0 0
        %676 = vmatprep.mubr.bf16.mxu0 0
        %677 = vmatmul.mubr.bf16.gmra.mrb[0].mxu0 %v642
        %v678 = vpop.f32.mrb[0].mxu0
        %v679 = vadd.f32 0.0, %v678
        %v680 = vpop.f32.mrb[0].mxu0
        %v681 = vpop.f32.mrb[0].mxu0
        %v682 = vadd.f32 0.0, %v681
        %v683 = vpop.f32.mrb[0].mxu0
        %684 = vdwg.mxu0
        %v685 = vmul.f32 %v634, -4.775
        %v686 = vmul.f32 %v637, -4.775
        %v687 = vmul.f32 %v679, 2.0315
        %v688 = vmul.f32 %v682, 2.0315
        %v689 = vadd.f32 %v685, %v687
        %v690 = vadd.f32 %v686, %v688
        %v691 = vadd.f32 %v689, %v164
        %v692 = vadd.f32 %v690, %v165
        %v693 = vpack.c.bf16 %v692, %v691
        %v695 = vsel %vm211, %v693, 0
        %697 = vmatprep.subr.bf16.mxu0 0
        %698 = vmatpush1.bf16.msra.mxu0 %v595
        %699 = vmatprep.subr.bf16.mxu0 0
        %700 = vmatpush1.bf16.msra.mxu0 0
        %701 = vmatprep.subr.bf16.mxu0 0
        %702 = vmatpush1.bf16.msra.mxu0 0
        %703 = vmatprep.subr.bf16.mxu0 0
        %704 = vmatpush1.bf16.msra.mxu0 0
        %705 = vmatprep.subr.bf16.mxu0 0
        %706 = vmatpush1.bf16.msra.mxu0 0
        %707 = vmatprep.subr.bf16.mxu0 0
        %708 = vmatpush1.bf16.msra.mxu0 0
        %709 = vmatprep.subr.bf16.mxu0 0
        %710 = vmatpush1.bf16.msra.mxu0 0
        %711 = vmatprep.subr.bf16.mxu0 0
        %712 = vmatpush1.bf16.msra.mxu0 0
        %713 = vmatprep.subr.bf16.mxu0 0
        %714 = vmatpush1.bf16.msra.mxu0 0
        %715 = vmatprep.subr.bf16.mxu0 0
        %716 = vmatpush1.bf16.msra.mxu0 0
        %717 = vmatprep.subr.bf16.mxu0 0
        %718 = vmatpush1.bf16.msra.mxu0 0
        %719 = vmatprep.subr.bf16.mxu0 0
        %720 = vmatpush1.bf16.msra.mxu0 0
        %721 = vmatprep.subr.bf16.mxu0 0
        %722 = vmatpush1.bf16.msra.mxu0 0
        %723 = vmatprep.subr.bf16.mxu0 0
        %724 = vmatpush1.bf16.msra.mxu0 0
        %725 = vmatprep.subr.bf16.mxu0 0
        %726 = vmatpush1.bf16.msra.mxu0 0
        %727 = vmatprep.subr.bf16.mxu0 0
        %728 = vmatpush1.bf16.msra.mxu0 0
        %729 = vmatprep.mubr.bf16.mxu0 0
        %730 = vmatmul.mubr.bf16.gmra.mrb[0].mxu0 %v695
        %v731 = vpop.f32.mrb[0].mxu0
        %v732 = vadd.f32 0.0, %v731
        %v733 = vpop.f32.mrb[0].mxu0
        %v734 = vpop.f32.mrb[0].mxu0
        %v735 = vadd.f32 0.0, %v734
        %v736 = vpop.f32.mrb[0].mxu0
        %737 = vdwg.mxu0
        %v738 = vpack.c.bf16 %v735, %v732
        %v740 = vsel %vm140, %v738, 0
        %742 = vmatprep.subr.bf16.mxu0 0
        %743 = vmatpush1.bf16.xpose.msra.mxu0 %v740
        %744 = vmatprep.subr.bf16.mxu0 0
        %745 = vmatpush1.bf16.xpose.msra.mxu0 0
        %746 = vmatprep.subr.bf16.mxu0 0
        %747 = vmatpush1.bf16.xpose.msra.mxu0 0
        %748 = vmatprep.subr.bf16.mxu0 0
        %749 = vmatpush1.bf16.xpose.msra.mxu0 0
        %750 = vmatprep.subr.bf16.mxu0 0
        %751 = vmatpush1.bf16.xpose.msra.mxu0 0
        %752 = vmatprep.subr.bf16.mxu0 0
        %753 = vmatpush1.bf16.xpose.msra.mxu0 0
        %754 = vmatprep.subr.bf16.mxu0 0
        %755 = vmatpush1.bf16.xpose.msra.mxu0 0
        %756 = vmatprep.subr.bf16.mxu0 0
        %757 = vmatpush1.bf16.xpose.msra.mxu0 0
        %758 = vmatprep.subr.bf16.mxu0 0
        %759 = vmatpush1.bf16.xpose.msra.mxu0 0
        %760 = vmatprep.subr.bf16.mxu0 0
        %761 = vmatpush1.bf16.xpose.msra.mxu0 0
        %762 = vmatprep.subr.bf16.mxu0 0
        %763 = vmatpush1.bf16.xpose.msra.mxu0 0
        %764 = vmatprep.subr.bf16.mxu0 0
        %765 = vmatpush1.bf16.xpose.msra.mxu0 0
        %766 = vmatprep.subr.bf16.mxu0 0
        %767 = vmatpush1.bf16.xpose.msra.mxu0 0
        %768 = vmatprep.subr.bf16.mxu0 0
        %769 = vmatpush1.bf16.xpose.msra.mxu0 0
        %770 = vmatprep.subr.bf16.mxu0 0
        %771 = vmatpush1.bf16.xpose.msra.mxu0 0
        %772 = vmatprep.subr.bf16.mxu0 0
        %773 = vmatpush1.bf16.xpose.msra.mxu0 0
        %774 = vmatprep.mubr.bf16.mxu0 0
        %775 = vmatmul.mubr.bf16.gmra.mrb[0].mxu0 %v740
        %v776 = vpop.f32.mrb[0].mxu0
        %v777 = vadd.f32 0.0, %v776
        %v778 = vpop.f32.mrb[0].mxu0
        %v779 = vpop.f32.mrb[0].mxu0
        %v780 = vadd.f32 0.0, %v779
        %v781 = vpop.f32.mrb[0].mxu0
        %782 = vdwg.mxu0
        %v783 = vpack.c.bf16 %v780, %v777
        %v785 = vsel %vm211, %v783, 0
        %787 = vmatprep.subr.bf16.mxu0 0
        %788 = vmatpush1.bf16.msra.mxu0 %v783
        %789 = vmatprep.subr.bf16.mxu0 0
        %790 = vmatpush1.bf16.msra.mxu0 0
        %791 = vmatprep.subr.bf16.mxu0 0
        %792 = vmatpush1.bf16.msra.mxu0 0
        %793 = vmatprep.subr.bf16.mxu0 0
        %794 = vmatpush1.bf16.msra.mxu0 0
        %795 = vmatprep.subr.bf16.mxu0 0
        %796 = vmatpush1.bf16.msra.mxu0 0
        %797 = vmatprep.subr.bf16.mxu0 0
        %798 = vmatpush1.bf16.msra.mxu0 0
        %799 = vmatprep.subr.bf16.mxu0 0
        %800 = vmatpush1.bf16.msra.mxu0 0
        %801 = vmatprep.subr.bf16.mxu0 0
        %802 = vmatpush1.bf16.msra.mxu0 0
        %803 = vmatprep.subr.bf16.mxu0 0
        %804 = vmatpush1.bf16.msra.mxu0 0
        %805 = vmatprep.subr.bf16.mxu0 0
        %806 = vmatpush1.bf16.msra.mxu0 0
        %807 = vmatprep.subr.bf16.mxu0 0
        %808 = vmatpush1.bf16.msra.mxu0 0
        %809 = vmatprep.subr.bf16.mxu0 0
        %810 = vmatpush1.bf16.msra.mxu0 0
        %811 = vmatprep.subr.bf16.mxu0 0
        %812 = vmatpush1.bf16.msra.mxu0 0
        %813 = vmatprep.subr.bf16.mxu0 0
        %814 = vmatpush1.bf16.msra.mxu0 0
        %815 = vmatprep.subr.bf16.mxu0 0
        %816 = vmatpush1.bf16.msra.mxu0 0
        %817 = vmatprep.subr.bf16.mxu0 0
        %818 = vmatpush1.bf16.msra.mxu0 0
        %819 = vmatprep.mubr.bf16.mxu0 0
        %820 = vmatmul.mubr.bf16.gmra.mrb[0].mxu0 %v785
        %v821 = vpop.f32.mrb[0].mxu0
        %v822 = vadd.f32 0.0, %v821
        %v823 = vpop.f32.mrb[0].mxu0
        %v824 = vpop.f32.mrb[0].mxu0
        %v825 = vadd.f32 0.0, %v824
        %v826 = vpop.f32.mrb[0].mxu0
        %827 = vdwg.mxu0
        %v828 = vmul.f32 %v777, -4.775
        %v829 = vmul.f32 %v780, -4.775
        %v830 = vmul.f32 %v822, 2.0315
        %v831 = vmul.f32 %v825, 2.0315
        %v832 = vadd.f32 %v828, %v830
        %v833 = vadd.f32 %v829, %v831
        %v834 = vadd.f32 %v832, %v164
        %v835 = vadd.f32 %v833, %v165
        %v836 = vmul.f32 %v834, -1.0
        %v837 = vmul.f32 %v835, -1.0
        %v838 = vpack.c.bf16 %v837, %v836
        %v840 = vsel %vm211, %v838, 0
        %842 = vmatprep.subr.bf16.mxu0 0
        %843 = vmatpush1.bf16.msra.mxu0 %v738
        %844 = vmatprep.subr.bf16.mxu0 0
        %845 = vmatpush1.bf16.msra.mxu0 0
        %846 = vmatprep.subr.bf16.mxu0 0
        %847 = vmatpush1.bf16.msra.mxu0 0
        %848 = vmatprep.subr.bf16.mxu0 0
        %849 = vmatpush1.bf16.msra.mxu0 0
        %850 = vmatprep.subr.bf16.mxu0 0
        %851 = vmatpush1.bf16.msra.mxu0 0
        %852 = vmatprep.subr.bf16.mxu0 0
        %853 = vmatpush1.bf16.msra.mxu0 0
        %854 = vmatprep.subr.bf16.mxu0 0
        %855 = vmatpush1.bf16.msra.mxu0 0
        %856 = vmatprep.subr.bf16.mxu0 0
        %857 = vmatpush1.bf16.msra.mxu0 0
        %858 = vmatprep.subr.bf16.mxu0 0
        %859 = vmatpush1.bf16.msra.mxu0 0
        %860 = vmatprep.subr.bf16.mxu0 0
        %861 = vmatpush1.bf16.msra.mxu0 0
        %862 = vmatprep.subr.bf16.mxu0 0
        %863 = vmatpush1.bf16.msra.mxu0 0
        %864 = vmatprep.subr.bf16.mxu0 0
        %865 = vmatpush1.bf16.msra.mxu0 0
        %866 = vmatprep.subr.bf16.mxu0 0
        %867 = vmatpush1.bf16.msra.mxu0 0
        %868 = vmatprep.subr.bf16.mxu0 0
        %869 = vmatpush1.bf16.msra.mxu0 0
        %870 = vmatprep.subr.bf16.mxu0 0
        %871 = vmatpush1.bf16.msra.mxu0 0
        %872 = vmatprep.subr.bf16.mxu0 0
        %873 = vmatpush1.bf16.msra.mxu0 0
        %874 = vmatprep.mubr.bf16.mxu0 0
        %875 = vmatmul.mubr.bf16.gmra.mrb[0].mxu0 %v840
        %v876 = vpop.f32.mrb[0].mxu0
        %v877 = vadd.f32 0.0, %v876
        %v878 = vpop.f32.mrb[0].mxu0
        %v879 = vpop.f32.mrb[0].mxu0
        %v880 = vadd.f32 0.0, %v879
        %v881 = vpop.f32.mrb[0].mxu0
        %882 = vdwg.mxu0
        %883 = vst.msk [vmem:[%s134] sm:$0xff] %vm140, %v877
        %884 = vst.msk [vmem:[%s134 + $0x8] sm:$0xff] %vm140, %v880
        %s885 = sand.u32 %s52, 1
        %s886 = scalar_lea.sflag [#allocation4], %s885
        %s887 = sand.u32 %s52, 1
        %s888 = smul.addr %s887, 16
        %s889 = scalar_lea.vmem [#allocation5], %s888
        // Predicated region
        $region29: #{tpu_custom_call.1} parent=23 // pred_check
          %p890 = pneg %p62
        $region30: #{tpu_custom_call.1} parent=23 // pred_check_branch
          %892 = sbr.rel (%p890) target = $region32
        $region31: #{tpu_custom_call.1} parent=23 // pred_region
          %s894 = ssub.s32 256, 256
          %895 = vsyncadd %s886, %s894
          %s896 = smul.addr %s18, 2
          %s897 = smul.addr %s896, 128
          %s898 = scalar_lea.hbm %s1, %s897
          %s899 = sshll.u32 %s889, 4
          %s900 = int_to_ptr.vmem [resolvable:$true] %s899
          %905 = dma.vmem_to_hbm [thread:$0]  %s900, 256, %s898, %s886, 128, 128, 8
        $region32: #{tpu_custom_call.1} parent=23 // pred_fallthru
          _
      $region24: #{tpu_custom_call.1} parent=5 // pred_fallthru
        _
      %p906 = scmp.le.s32.totalorder 2, %s13
      // Predicated region
      $region33: #{tpu_custom_call.1} parent=5 // pred_check
        %p907 = pneg %p906
      $region34: #{tpu_custom_call.1} parent=5 // pred_check_branch
        %909 = sbr.rel (%p907) target = $region36
      $region35: #{tpu_custom_call.1} parent=5 // pred_region
        %s910 = ssub.s32 %s13, 2
        // Predicated region
        $region37: #{tpu_custom_call.1} parent=35 // pred_check
          %p911 = pneg %p68
        $region38: #{tpu_custom_call.1} parent=35 // pred_check_branch
          %913 = sbr.rel (%p911) target = $region40
        $region39: #{tpu_custom_call.1} parent=35 // pred_region
          %s914 = sand.u32 %s53, 1
          %s915 = scalar_lea.sflag [#allocation4], %s914
          %s916 = sand.u32 %s53, 1
          %s917 = smul.addr %s916, 16
          %s918 = scalar_lea.vmem [#allocation5], %s917
          %919 = dma.done %s915, 256
        $region40: #{tpu_custom_call.1} parent=35 // pred_fallthru
          _
      $region36: #{tpu_custom_call.1} parent=5 // pred_fallthru
        _
    $region6: #{tpu_custom_call.1} parent=1 // loop_footer
      %s17 = sadd.s32 1, %s13
    $region7: #{tpu_custom_call.1} parent=1 // loop_footer_branch
      %12 = sbr.rel target = $region3
    $region8: #{tpu_custom_call.1} parent=1 // loop_exit
      _
    %920 = vsyncpa [#allocation3], 1
    %s921 = scalar_lea.sflag [#allocation3], 1
    %922 = vsyncpa %s921, 1
    %923 = vsyncpa [#allocation4], 1
    %s924 = scalar_lea.sflag [#allocation4], 1
    %925 = vsyncpa %s924, 1

</llo_original>
